<compile_context>
chip_gen: v5e
topology: v5e:2x2
jax: 0.10.0
libtpu: 0.0.40
codegen_flags: <defaults>
</compile_context>

<pallas_src>
import math
import functools

import jax
import jax.numpy as jnp
from jax import lax
from jax.experimental import pallas as pl
from jax.experimental.pallas import tpu as pltpu

LEAK = 0.2
INV_SQRT2 = 1.0 / math.sqrt(2.0)
BN_EPS = 1e-5


def _make_kernel(H, W, Cin, C, has_shortcut_conv):
    """Fused DecoderResBlock kernel for one batch element (lane-dense)."""
    WC = W * C

    def _forward(xp_ref, xc_ref, wb1_ref, wb2_ref, aff_ref, wsc_ref, bsc_ref,
                 out_ref, pad_ref):
        # xp_ref : (1, H+2, W*Cin) f32  vertically zero-padded input, lane-dense
        # xc_ref : (1, H,   W*Cin) f32  unpadded input (shortcut path)
        # wb1_ref: (3, W*Cin, W*C) bf16 width-banded conv1 weights (one per dy)
        # wb2_ref: (3, W*C,  W*C) bf16  width-banded conv2 weights (one per dy)
        # aff_ref: (4, W*C) f32         (scale1, shift1, scale2, shift2) tiled over w
        # pad_ref: (H+2, W*C) f32       vertically padded h1 scratch

        # ---- conv1: three banded MXU matmuls (one per dy), f32 accumulation ----
        acc = jnp.dot(xp_ref[0, 0:H, :].astype(jnp.bfloat16), wb1_ref[0],
                      preferred_element_type=jnp.float32)
        acc = acc + jnp.dot(xp_ref[0, 1:H + 1, :].astype(jnp.bfloat16), wb1_ref[1],
                            preferred_element_type=jnp.float32)
        acc = acc + jnp.dot(xp_ref[0, 2:H + 2, :].astype(jnp.bfloat16), wb1_ref[2],
                            preferred_element_type=jnp.float32)
        # folded (conv-bias + eval-mode BN) per-channel affine, then LeakyReLU
        acc = acc * aff_ref[0:1, :] + aff_ref[1:2, :]
        h1 = jnp.where(acc > 0, acc, LEAK * acc)              # (H, W*C) f32

        # ---- vertical zero-pad of h1: full-width aligned stores only ----
        # Border rows re-zeroed every step (scratch is per-core and the
        # parallel batch axis may be split across TensorCores on v7x).
        pad_ref[0:1, :] = jnp.zeros((1, WC), jnp.float32)
        pad_ref[H + 1:H + 2, :] = jnp.zeros((1, WC), jnp.float32)
        pad_ref[1:H + 1, :] = h1

        # ---- conv2: three banded MXU matmuls over the padded h1 slab ----
        acc2 = jnp.dot(pad_ref[0:H, :].astype(jnp.bfloat16), wb2_ref[0],
                       preferred_element_type=jnp.float32)
        acc2 = acc2 + jnp.dot(pad_ref[1:H + 1, :].astype(jnp.bfloat16), wb2_ref[1],
                              preferred_element_type=jnp.float32)
        acc2 = acc2 + jnp.dot(pad_ref[2:H + 2, :].astype(jnp.bfloat16), wb2_ref[2],
                              preferred_element_type=jnp.float32)
        acc2 = acc2 * aff_ref[2:3, :] + aff_ref[3:4, :]
        y = jnp.where(acc2 > 0, acc2, LEAK * acc2)            # (H, W*C) f32

        # ---- shortcut ----
        if has_shortcut_conv:
            # 1x1 conv == block-diagonal banded matmul (bf16 operands, f32 acc)
            sc = jnp.dot(xc_ref[0].astype(jnp.bfloat16), wsc_ref[...],
                         preferred_element_type=jnp.float32) + bsc_ref[...]
        else:
            sc = xc_ref[0]                                    # Cin == C, exact f32

        # lane-dense (H, W*C) output -> unmasked full-lane stores
        out_ref[0] = (sc + y) * INV_SQRT2

    if has_shortcut_conv:
        def kernel(xp_ref, xc_ref, wb1_ref, wb2_ref, aff_ref, wsc_ref, bsc_ref,
                   out_ref, pad_ref):
            _forward(xp_ref, xc_ref, wb1_ref, wb2_ref, aff_ref, wsc_ref, bsc_ref,
                     out_ref, pad_ref)
    else:
        def kernel(xp_ref, xc_ref, wb1_ref, wb2_ref, aff_ref, out_ref, pad_ref):
            _forward(xp_ref, xc_ref, wb1_ref, wb2_ref, aff_ref, None, None,
                     out_ref, pad_ref)

    return kernel


def _band_weights(w, W):
    """(Cout, Cin, 3, 3) conv weights -> (3, W*Cin, W*Cout) width-banded bf16.

    band[dy][wi*Cin + ci, wo*Cout + co] = w[co, ci, dy, dx] where wi = wo+dx-1,
    zero outside the band (this folds the width zero-padding of the conv).
    """
    wt = jnp.transpose(w, (2, 3, 1, 0)).astype(jnp.float32)   # (dy, dx, Cin, Cout)
    bands = []
    for dy in range(3):
        b = None
        for dx in range(3):
            shift = dx - 1                                    # wi = wo + shift
            diag = jnp.eye(W, W, k=-shift, dtype=jnp.float32)  # diag[wi, wo]=1
            term = jnp.kron(diag, wt[dy, dx])
            b = term if b is None else b + term
        bands.append(b)
    return jnp.stack(bands, axis=0).astype(jnp.bfloat16)


def decoder_res_block_pallas(x_nchw, params, use_bn):
    """Forward pass of DecoderResBlock. x_nchw: (N, Cin, H, W) float32."""
    N, Cin, H, W = x_nchw.shape
    C = params["w1"].shape[0]
    has_shortcut_conv = (C != Cin)
    WC, WCin = W * C, W * Cin

    # NCHW -> lane-dense NHWC slabs (channels fastest on the lane axis).
    x_nhwc = jnp.transpose(x_nchw, (0, 2, 3, 1)).astype(jnp.float32)
    xc = x_nhwc.reshape(N, H, WCin)                           # shortcut input
    xp = jnp.pad(x_nhwc, ((0, 0), (1, 1), (0, 0), (0, 0))).reshape(N, H + 2, WCin)

    wb1 = _band_weights(params["w1"], W)                      # (3, W*Cin, W*C)
    wb2 = _band_weights(params["w2"], W)                      # (3, W*C,  W*C)

    if use_bn:  # fold eval-mode BN into per-channel scale/shift
        s1 = params["bn1_gamma"] / jnp.sqrt(params["bn1_var"] + BN_EPS)
        t1 = params["bn1_beta"] - params["bn1_mean"] * s1
        s2 = params["bn2_gamma"] / jnp.sqrt(params["bn2_var"] + BN_EPS)
        t2 = params["bn2_beta"] - params["bn2_mean"] * s2
    else:
        s1 = s2 = jnp.ones((C,), jnp.float32)
        t1 = t2 = jnp.zeros((C,), jnp.float32)
    # fold conv biases: s*(conv + b) + t = s*conv + (s*b + t); tile over width
    sh1 = s1 * params["b1"] + t1
    sh2 = s2 * params["b2"] + t2
    aff = jnp.stack([jnp.tile(s1, W), jnp.tile(sh1, W),
                     jnp.tile(s2, W), jnp.tile(sh2, W)], axis=0).astype(jnp.float32)

    kernel = _make_kernel(H, W, Cin, C, has_shortcut_conv)

    def full(shape):
        return pl.BlockSpec(shape, lambda n: (0,) * len(shape))

    in_specs = [
        pl.BlockSpec((1, H + 2, WCin), lambda n: (n, 0, 0)),  # padded input
        pl.BlockSpec((1, H, WCin), lambda n: (n, 0, 0)),      # shortcut input
        full((3, WCin, WC)),                                  # wb1 (bf16)
        full((3, WC, WC)),                                    # wb2 (bf16)
        full((4, WC)),                                        # folded affine
    ]
    args = [xp, xc, wb1, wb2, aff]
    if has_shortcut_conv:
        wsc = jnp.kron(jnp.eye(W, dtype=jnp.float32),
                       jnp.transpose(params["wsc"][:, :, 0, 0], (1, 0)
                                     ).astype(jnp.float32)).astype(jnp.bfloat16)
        bsc = jnp.tile(params["bsc"], W).reshape(1, WC).astype(jnp.float32)
        in_specs += [full((WCin, WC)), full((1, WC))]
        args += [wsc, bsc]
    # (identity-shortcut path skips the wsc/bsc DMAs entirely)

    matmul_flops_per_n = (3 * 2 * H * WCin * WC + 3 * 2 * H * WC * WC
                          + (2 * H * WCin * WC if has_shortcut_conv else 0))
    cost = pl.CostEstimate(
        flops=N * matmul_flops_per_n,
        transcendentals=0,
        bytes_accessed=int(xp.size * 4 + xc.size * 4 + N * H * WC * 4
                           + wb1.size * 2 + wb2.size * 2 + aff.size * 4))

    out_lane = pl.pallas_call(
        kernel,
        out_shape=jax.ShapeDtypeStruct((N, H, WC), jnp.float32),  # lane-dense
        grid_spec=pltpu.PrefetchScalarGridSpec(
            num_scalar_prefetch=0,
            grid=(N,),   # one image per step; parallel for v7x megacore
            in_specs=in_specs,
            out_specs=pl.BlockSpec((1, H, WC), lambda n: (n, 0, 0)),
            scratch_shapes=[
                pltpu.VMEM((H + 2, WC), jnp.float32),   # vertically padded h1
            ],
        ),
        compiler_params=pltpu.CompilerParams(
            dimension_semantics=("parallel",)),
        cost_estimate=cost,
    )(*args)

    # lane-dense (N, H, W*C) -> NHWC (free, contiguous) -> NCHW
    out_nhwc = out_lane.reshape(N, H, W, C)
    return jnp.transpose(out_nhwc, (0, 3, 1, 2))


def decoder_res_block_ref(x, params, use_bn):
    """Pure-JAX reference mirroring the PyTorch forward (eval-mode BN)."""
    def conv(x, w, b, pad):
        y = lax.conv_general_dilated(
            x, w, (1, 1), [(pad, pad), (pad, pad)],
            dimension_numbers=("NCHW", "OIHW", "NCHW"))
        return y + b.reshape(1, -1, 1, 1)

    def bn(x, g, b, m, v):
        g, b, m, v = (a.reshape(1, -1, 1, 1) for a in (g, b, m, v))
        return g * (x - m) / jnp.sqrt(v + BN_EPS) + b

    lrelu = lambda z: jnp.where(z > 0, z, LEAK * z)

    h = conv(x, params["w1"], params["b1"], 1)
    if use_bn:
        h = bn(h, params["bn1_gamma"], params["bn1_beta"],
               params["bn1_mean"], params["bn1_var"])
    h = lrelu(h)
    h = conv(h, params["w2"], params["b2"], 1)
    if use_bn:
        h = bn(h, params["bn2_gamma"], params["bn2_beta"],
               params["bn2_mean"], params["bn2_var"])
    y = lrelu(h)
    if params["w1"].shape[0] != x.shape[1]:
        sc = conv(x, params["wsc"], params["bsc"], 0)
    else:
        sc = x
    return (sc + y) / jnp.sqrt(2.0)


def init_params(key, in_c, conv_size):
    ks = jax.random.split(key, 8)
    p = {
        "w1": 0.1 * jax.random.normal(ks[0], (conv_size, in_c, 3, 3), jnp.float32),
        "b1": 0.1 * jax.random.normal(ks[1], (conv_size,), jnp.float32),
        "w2": 0.1 * jax.random.normal(ks[2], (conv_size, conv_size, 3, 3), jnp.float32),
        "b2": 0.1 * jax.random.normal(ks[3], (conv_size,), jnp.float32),
        # BatchNorm (eval-mode) parameters / running stats
        "bn1_gamma": 1.0 + 0.1 * jax.random.normal(ks[4], (conv_size,), jnp.float32),
        "bn1_beta": 0.1 * jax.random.normal(ks[5], (conv_size,), jnp.float32),
        "bn1_mean": 0.05 * jnp.arange(conv_size, dtype=jnp.float32),
        "bn1_var": 1.0 + 0.02 * jnp.arange(conv_size, dtype=jnp.float32),
        "bn2_gamma": 1.0 + 0.1 * jax.random.normal(ks[6], (conv_size,), jnp.float32),
        "bn2_beta": 0.1 * jax.random.normal(ks[7], (conv_size,), jnp.float32),
        "bn2_mean": -0.03 * jnp.arange(conv_size, dtype=jnp.float32),
        "bn2_var": 1.0 + 0.01 * jnp.arange(conv_size, dtype=jnp.float32),
    }
    if conv_size != in_c:
        k1, k2 = jax.random.split(jax.random.PRNGKey(1234))
        p["wsc"] = 0.1 * jax.random.normal(k1, (conv_size, in_c, 1, 1), jnp.float32)
        p["bsc"] = 0.1 * jax.random.normal(k2, (conv_size,), jnp.float32)
    return p


if __name__ == "__main__":
    N, in_c, conv_size, H, W = 2, 4, 8, 16, 16
    use_bn = True

    key = jax.random.PRNGKey(0)
    kx, kp = jax.random.split(key)
    x = jax.random.normal(kx, (N, in_c, H, W), jnp.float32)
    params = init_params(kp, in_c, conv_size)

    fwd = jax.jit(functools.partial(decoder_res_block_pallas, use_bn=use_bn))
    out = fwd(x, params)
    out = jax.block_until_ready(out)

    ref = decoder_res_block_ref(x, params, use_bn)
    assert out.shape == (N, conv_size, H, W), out.shape
    # bf16 matmul operands (f32 accumulation, f32 residual path) -> relax tolerance.
    assert jnp.allclose(out, ref, atol=3e-2, rtol=3e-2), (
        float(jnp.max(jnp.abs(out - ref))))

    print("KERNEL_OK")
</pallas_src>

<mosaic_0001>
module attributes {stable_mosaic.version = 11 : i64} {
  func.func @kernel(%arg0: i32, %arg1: memref<1x18x64xf32, #tpu.memory_space<vmem>>, %arg2: memref<1x16x64xf32, #tpu.memory_space<vmem>>, %arg3: memref<3x64x128xbf16, #tpu.memory_space<vmem>>, %arg4: memref<3x128x128xbf16, #tpu.memory_space<vmem>>, %arg5: memref<4x128xf32, #tpu.memory_space<vmem>>, %arg6: memref<64x128xbf16, #tpu.memory_space<vmem>>, %arg7: memref<1x128xf32, #tpu.memory_space<vmem>>, %arg8: memref<1x16x128xf32, #tpu.memory_space<vmem>>, %arg9: memref<18x128xf32, #tpu.memory_space<vmem>>) attributes {dimension_semantics = [#tpu.dimension_semantics<parallel>], iteration_bounds = array<i64: 2>, scalar_prefetch = 0 : i64, scratch_operands = 1 : i64, tpu.core_type = #tpu.core_type<tc>, window_params = [{transform_indices = @transform_0, window_bounds = array<i64: 1, 18, 64>}, {transform_indices = @transform_1, window_bounds = array<i64: 1, 16, 64>}, {pipeline_mode = #tpu.pipeline_mode<synchronous>, transform_indices = @transform_2, window_bounds = array<i64: 3, 64, 128>}, {pipeline_mode = #tpu.pipeline_mode<synchronous>, transform_indices = @transform_3, window_bounds = array<i64: 3, 128, 128>}, {pipeline_mode = #tpu.pipeline_mode<synchronous>, transform_indices = @transform_4, window_bounds = array<i64: 4, 128>}, {pipeline_mode = #tpu.pipeline_mode<synchronous>, transform_indices = @transform_5, window_bounds = array<i64: 64, 128>}, {pipeline_mode = #tpu.pipeline_mode<synchronous>, transform_indices = @transform_6, window_bounds = array<i64: 1, 128>}, {transform_indices = @transform_7, window_bounds = array<i64: 1, 16, 128>}]} {
    %c0 = arith.constant 0 : index
    %c0_0 = arith.constant 0 : index
    %c0_1 = arith.constant 0 : index
    %0 = vector.load %arg1[%c0, %c0_0, %c0_1] : memref<1x18x64xf32, #tpu.memory_space<vmem>>, vector<1x16x64xf32>
    %1 = vector.shape_cast %0 : vector<1x16x64xf32> to vector<16x64xf32>
    %2 = arith.truncf %1 : vector<16x64xf32> to vector<16x64xbf16>
    %c0_2 = arith.constant 0 : index
    %c0_3 = arith.constant 0 : index
    %c0_4 = arith.constant 0 : index
    %3 = vector.load %arg3[%c0_2, %c0_3, %c0_4] : memref<3x64x128xbf16, #tpu.memory_space<vmem>>, vector<1x64x128xbf16>
    %4 = vector.shape_cast %3 : vector<1x64x128xbf16> to vector<64x128xbf16>
    %cst = arith.constant dense<0.000000e+00> : vector<16x128xf32>
    %5 = tpu.matmul %2, %4, %cst {dimension_numbers = #tpu.dot_dimension_numbers<[1], [0], [0], [1], [0, 0, 1, 1], [], []>} : vector<16x64xbf16>, vector<64x128xbf16>, vector<16x128xf32> -> vector<16x128xf32>
    %c0_5 = arith.constant 0 : index
    %c1 = arith.constant 1 : index
    %c0_6 = arith.constant 0 : index
    %6 = vector.load %arg1[%c0_5, %c1, %c0_6] : memref<1x18x64xf32, #tpu.memory_space<vmem>>, vector<1x16x64xf32>
    %7 = vector.shape_cast %6 : vector<1x16x64xf32> to vector<16x64xf32>
    %8 = arith.truncf %7 : vector<16x64xf32> to vector<16x64xbf16>
    %c1_7 = arith.constant 1 : index
    %c0_8 = arith.constant 0 : index
    %c0_9 = arith.constant 0 : index
    %9 = vector.load %arg3[%c1_7, %c0_8, %c0_9] : memref<3x64x128xbf16, #tpu.memory_space<vmem>>, vector<1x64x128xbf16>
    %10 = vector.shape_cast %9 : vector<1x64x128xbf16> to vector<64x128xbf16>
    %cst_10 = arith.constant dense<0.000000e+00> : vector<16x128xf32>
    %11 = tpu.matmul %8, %10, %cst_10 {dimension_numbers = #tpu.dot_dimension_numbers<[1], [0], [0], [1], [0, 0, 1, 1], [], []>} : vector<16x64xbf16>, vector<64x128xbf16>, vector<16x128xf32> -> vector<16x128xf32>
    %12 = arith.addf %5, %11 : vector<16x128xf32>
    %c0_11 = arith.constant 0 : index
    %c2 = arith.constant 2 : index
    %c0_12 = arith.constant 0 : index
    %13 = vector.load %arg1[%c0_11, %c2, %c0_12] : memref<1x18x64xf32, #tpu.memory_space<vmem>>, vector<1x16x64xf32>
    %14 = vector.shape_cast %13 : vector<1x16x64xf32> to vector<16x64xf32>
    %15 = arith.truncf %14 : vector<16x64xf32> to vector<16x64xbf16>
    %c2_13 = arith.constant 2 : index
    %c0_14 = arith.constant 0 : index
    %c0_15 = arith.constant 0 : index
    %16 = vector.load %arg3[%c2_13, %c0_14, %c0_15] : memref<3x64x128xbf16, #tpu.memory_space<vmem>>, vector<1x64x128xbf16>
    %17 = vector.shape_cast %16 : vector<1x64x128xbf16> to vector<64x128xbf16>
    %cst_16 = arith.constant dense<0.000000e+00> : vector<16x128xf32>
    %18 = tpu.matmul %15, %17, %cst_16 {dimension_numbers = #tpu.dot_dimension_numbers<[1], [0], [0], [1], [0, 0, 1, 1], [], []>} : vector<16x64xbf16>, vector<64x128xbf16>, vector<16x128xf32> -> vector<16x128xf32>
    %19 = arith.addf %12, %18 : vector<16x128xf32>
    %c0_17 = arith.constant 0 : index
    %c0_18 = arith.constant 0 : index
    %20 = vector.load %arg5[%c0_17, %c0_18] : memref<4x128xf32, #tpu.memory_space<vmem>>, vector<1x128xf32>
    %21 = vector.broadcast %20 : vector<1x128xf32> to vector<16x128xf32>
    %22 = arith.mulf %19, %21 : vector<16x128xf32>
    %c1_19 = arith.constant 1 : index
    %c0_20 = arith.constant 0 : index
    %23 = vector.load %arg5[%c1_19, %c0_20] : memref<4x128xf32, #tpu.memory_space<vmem>>, vector<1x128xf32>
    %24 = vector.broadcast %23 : vector<1x128xf32> to vector<16x128xf32>
    %25 = arith.addf %22, %24 : vector<16x128xf32>
    %cst_21 = arith.constant 0.000000e+00 : f32
    %26 = vector.broadcast %cst_21 : f32 to vector<16x128xf32>
    %27 = arith.cmpf ogt, %25, %26 : vector<16x128xf32>
    %cst_22 = arith.constant 2.000000e-01 : f32
    %28 = vector.broadcast %cst_22 : f32 to vector<16x128xf32>
    %29 = arith.mulf %28, %25 : vector<16x128xf32>
    %30 = arith.select %27, %25, %29 : vector<16x128xi1>, vector<16x128xf32>
    %cst_23 = arith.constant 0.000000e+00 : f32
    %31 = vector.broadcast %cst_23 : f32 to vector<1x128xf32>
    %c0_24 = arith.constant 0 : index
    %c0_25 = arith.constant 0 : index
    %32 = vector.load %arg9[%c0_24, %c0_25] : memref<18x128xf32, #tpu.memory_space<vmem>>, vector<1x128xf32>
    tpu.vector_store %arg9[%c0_24, %c0_25], %31 {strides = array<i32>} : memref<18x128xf32, #tpu.memory_space<vmem>>, vector<1x128xf32>,
    %cst_26 = arith.constant 0.000000e+00 : f32
    %33 = vector.broadcast %cst_26 : f32 to vector<1x128xf32>
    %c17 = arith.constant 17 : index
    %c0_27 = arith.constant 0 : index
    %34 = vector.load %arg9[%c17, %c0_27] : memref<18x128xf32, #tpu.memory_space<vmem>>, vector<1x128xf32>
    tpu.vector_store %arg9[%c17, %c0_27], %33 {strides = array<i32>} : memref<18x128xf32, #tpu.memory_space<vmem>>, vector<1x128xf32>,
    %c1_28 = arith.constant 1 : index
    %c0_29 = arith.constant 0 : index
    %35 = vector.load %arg9[%c1_28, %c0_29] : memref<18x128xf32, #tpu.memory_space<vmem>>, vector<16x128xf32>
    tpu.vector_store %arg9[%c1_28, %c0_29], %30 {strides = array<i32>} : memref<18x128xf32, #tpu.memory_space<vmem>>, vector<16x128xf32>,
    %c0_30 = arith.constant 0 : index
    %c0_31 = arith.constant 0 : index
    %36 = vector.load %arg9[%c0_30, %c0_31] : memref<18x128xf32, #tpu.memory_space<vmem>>, vector<16x128xf32>
    %37 = arith.truncf %36 : vector<16x128xf32> to vector<16x128xbf16>
    %c0_32 = arith.constant 0 : index
    %c0_33 = arith.constant 0 : index
    %c0_34 = arith.constant 0 : index
    %38 = vector.load %arg4[%c0_32, %c0_33, %c0_34] : memref<3x128x128xbf16, #tpu.memory_space<vmem>>, vector<1x128x128xbf16>
    %39 = vector.shape_cast %38 : vector<1x128x128xbf16> to vector<128x128xbf16>
    %cst_35 = arith.constant dense<0.000000e+00> : vector<16x128xf32>
    %40 = tpu.matmul %37, %39, %cst_35 {dimension_numbers = #tpu.dot_dimension_numbers<[1], [0], [0], [1], [0, 0, 1, 1], [], []>} : vector<16x128xbf16>, vector<128x128xbf16>, vector<16x128xf32> -> vector<16x128xf32>
    %c1_36 = arith.constant 1 : index
    %c0_37 = arith.constant 0 : index
    %41 = vector.load %arg9[%c1_36, %c0_37] : memref<18x128xf32, #tpu.memory_space<vmem>>, vector<16x128xf32>
    %42 = arith.truncf %41 : vector<16x128xf32> to vector<16x128xbf16>
    %c1_38 = arith.constant 1 : index
    %c0_39 = arith.constant 0 : index
    %c0_40 = arith.constant 0 : index
    %43 = vector.load %arg4[%c1_38, %c0_39, %c0_40] : memref<3x128x128xbf16, #tpu.memory_space<vmem>>, vector<1x128x128xbf16>
    %44 = vector.shape_cast %43 : vector<1x128x128xbf16> to vector<128x128xbf16>
    %cst_41 = arith.constant dense<0.000000e+00> : vector<16x128xf32>
    %45 = tpu.matmul %42, %44, %cst_41 {dimension_numbers = #tpu.dot_dimension_numbers<[1], [0], [0], [1], [0, 0, 1, 1], [], []>} : vector<16x128xbf16>, vector<128x128xbf16>, vector<16x128xf32> -> vector<16x128xf32>
    %46 = arith.addf %40, %45 : vector<16x128xf32>
    %c2_42 = arith.constant 2 : index
    %c0_43 = arith.constant 0 : index
    %47 = vector.load %arg9[%c2_42, %c0_43] : memref<18x128xf32, #tpu.memory_space<vmem>>, vector<16x128xf32>
    %48 = arith.truncf %47 : vector<16x128xf32> to vector<16x128xbf16>
    %c2_44 = arith.constant 2 : index
    %c0_45 = arith.constant 0 : index
    %c0_46 = arith.constant 0 : index
    %49 = vector.load %arg4[%c2_44, %c0_45, %c0_46] : memref<3x128x128xbf16, #tpu.memory_space<vmem>>, vector<1x128x128xbf16>
    %50 = vector.shape_cast %49 : vector<1x128x128xbf16> to vector<128x128xbf16>
    %cst_47 = arith.constant dense<0.000000e+00> : vector<16x128xf32>
    %51 = tpu.matmul %48, %50, %cst_47 {dimension_numbers = #tpu.dot_dimension_numbers<[1], [0], [0], [1], [0, 0, 1, 1], [], []>} : vector<16x128xbf16>, vector<128x128xbf16>, vector<16x128xf32> -> vector<16x128xf32>
    %52 = arith.addf %46, %51 : vector<16x128xf32>
    %c2_48 = arith.constant 2 : index
    %c0_49 = arith.constant 0 : index
    %53 = vector.load %arg5[%c2_48, %c0_49] : memref<4x128xf32, #tpu.memory_space<vmem>>, vector<1x128xf32>
    %54 = vector.broadcast %53 : vector<1x128xf32> to vector<16x128xf32>
    %55 = arith.mulf %52, %54 : vector<16x128xf32>
    %c3 = arith.constant 3 : index
    %c0_50 = arith.constant 0 : index
    %56 = vector.load %arg5[%c3, %c0_50] : memref<4x128xf32, #tpu.memory_space<vmem>>, vector<1x128xf32>
    %57 = vector.broadcast %56 : vector<1x128xf32> to vector<16x128xf32>
    %58 = arith.addf %55, %57 : vector<16x128xf32>
    %cst_51 = arith.constant 0.000000e+00 : f32
    %59 = vector.broadcast %cst_51 : f32 to vector<16x128xf32>
    %60 = arith.cmpf ogt, %58, %59 : vector<16x128xf32>
    %cst_52 = arith.constant 2.000000e-01 : f32
    %61 = vector.broadcast %cst_52 : f32 to vector<16x128xf32>
    %62 = arith.mulf %61, %58 : vector<16x128xf32>
    %63 = arith.select %60, %58, %62 : vector<16x128xi1>, vector<16x128xf32>
    %c0_53 = arith.constant 0 : index
    %c0_54 = arith.constant 0 : index
    %c0_55 = arith.constant 0 : index
    %64 = vector.load %arg2[%c0_53, %c0_54, %c0_55] : memref<1x16x64xf32, #tpu.memory_space<vmem>>, vector<1x16x64xf32>
    %65 = vector.shape_cast %64 : vector<1x16x64xf32> to vector<16x64xf32>
    %66 = arith.truncf %65 : vector<16x64xf32> to vector<16x64xbf16>
    %c0_56 = arith.constant 0 : index
    %c0_57 = arith.constant 0 : index
    %67 = vector.load %arg6[%c0_56, %c0_57] : memref<64x128xbf16, #tpu.memory_space<vmem>>, vector<64x128xbf16>
    %cst_58 = arith.constant dense<0.000000e+00> : vector<16x128xf32>
    %68 = tpu.matmul %66, %67, %cst_58 {dimension_numbers = #tpu.dot_dimension_numbers<[1], [0], [0], [1], [0, 0, 1, 1], [], []>} : vector<16x64xbf16>, vector<64x128xbf16>, vector<16x128xf32> -> vector<16x128xf32>
    %c0_59 = arith.constant 0 : index
    %c0_60 = arith.constant 0 : index
    %69 = vector.load %arg7[%c0_59, %c0_60] : memref<1x128xf32, #tpu.memory_space<vmem>>, vector<1x128xf32>
    %70 = vector.broadcast %69 : vector<1x128xf32> to vector<16x128xf32>
    %71 = arith.addf %68, %70 : vector<16x128xf32>
    %72 = arith.addf %71, %63 : vector<16x128xf32>
    %cst_61 = arith.constant 0.707106769 : f32
    %73 = vector.broadcast %cst_61 : f32 to vector<16x128xf32>
    %74 = arith.mulf %72, %73 : vector<16x128xf32>
    %c0_62 = arith.constant 0 : index
    %c0_63 = arith.constant 0 : index
    %c0_64 = arith.constant 0 : index
    %75 = vector.load %arg8[%c0_62, %c0_63, %c0_64] : memref<1x16x128xf32, #tpu.memory_space<vmem>>, vector<1x16x128xf32>
    %76 = vector.shape_cast %75 : vector<1x16x128xf32> to vector<16x128xf32>
    %77 = vector.shape_cast %74 : vector<16x128xf32> to vector<1x16x128xf32>
    tpu.vector_store %arg8[%c0_62, %c0_63, %c0_64], %77 {strides = array<i32>} : memref<1x16x128xf32, #tpu.memory_space<vmem>>, vector<1x16x128xf32>,
    return
  }
  func.func @transform_0(%arg0: i32) -> (i32, i32, i32) {
    %c0_i32 = arith.constant 0 : i32
    %c0_i32_0 = arith.constant 0 : i32
    %c0_i32_1 = arith.constant 0 : i32
    return %arg0, %c0_i32, %c0_i32_0 : i32, i32, i32
  }
  func.func @transform_1(%arg0: i32) -> (i32, i32, i32) {
    %c0_i32 = arith.constant 0 : i32
    %c0_i32_0 = arith.constant 0 : i32
    %c0_i32_1 = arith.constant 0 : i32
    return %arg0, %c0_i32, %c0_i32_0 : i32, i32, i32
  }
  func.func @transform_2(%arg0: i32) -> (i32, i32, i32) {
    %c0_i32 = arith.constant 0 : i32
    %c0_i32_0 = arith.constant 0 : i32
    %c0_i32_1 = arith.constant 0 : i32
    %c0_i32_2 = arith.constant 0 : i32
    return %c0_i32, %c0_i32_0, %c0_i32_1 : i32, i32, i32
  }
  func.func @transform_3(%arg0: i32) -> (i32, i32, i32) {
    %c0_i32 = arith.constant 0 : i32
    %c0_i32_0 = arith.constant 0 : i32
    %c0_i32_1 = arith.constant 0 : i32
    %c0_i32_2 = arith.constant 0 : i32
    return %c0_i32, %c0_i32_0, %c0_i32_1 : i32, i32, i32
  }
  func.func @transform_4(%arg0: i32) -> (i32, i32) {
    %c0_i32 = arith.constant 0 : i32
    %c0_i32_0 = arith.constant 0 : i32
    %c0_i32_1 = arith.constant 0 : i32
    return %c0_i32, %c0_i32_0 : i32, i32
  }
  func.func @transform_5(%arg0: i32) -> (i32, i32) {
    %c0_i32 = arith.constant 0 : i32
    %c0_i32_0 = arith.constant 0 : i32
    %c0_i32_1 = arith.constant 0 : i32
    return %c0_i32, %c0_i32_0 : i32, i32
  }
  func.func @transform_6(%arg0: i32) -> (i32, i32) {
    %c0_i32 = arith.constant 0 : i32
    %c0_i32_0 = arith.constant 0 : i32
    %c0_i32_1 = arith.constant 0 : i32
    return %c0_i32, %c0_i32_0 : i32, i32
  }
  func.func @transform_7(%arg0: i32) -> (i32, i32, i32) {
    %c0_i32 = arith.constant 0 : i32
    %c0_i32_0 = arith.constant 0 : i32
    %c0_i32_1 = arith.constant 0 : i32
    return %arg0, %c0_i32, %c0_i32_0 : i32, i32, i32
  }
}

</mosaic_0001>

<llo_original>
// kernel: tile.28
$region0: #{tile.28}
  #allocation0 [shape = 's32[1]{0}', space=sflag, size = 0x4, scoped, tag = 'scoped memory for tile.28']
  %s0 = inlined_call_operand.vmem [shape: f32[8], index: 0, kind: input, shape index: {}]
  %s1 = inlined_call_operand.vmem [shape: f32[16,8], index: 1, kind: output, shape index: {}]
  // Predicated region
  $region2: #{tile.28} parent=0 // pred_check
    _
  $region3: #{tile.28} parent=0 // pred_check_branch
    %3 = sbr.rel (0) target = $region5
  $region4: #{tile.28} parent=0 // pred_region
    _
  $region5: #{tile.28} parent=0 // pred_fallthru
    _
  %v4 = vld [vmem:[%s0] ss:$0 sm:$0xff]
  %5 = vst [vmem:[%s1] sm:$0xff] %v4
  %s6 = scalar_lea.vmem %s1, 8
  %7 = vst [vmem:[%s6] sm:$0xff] %v4

// kernel: tile.41
$region0: #{tile.41}
  %s0 = inlined_call_operand.vmem [shape: f32[16,8], index: 0, kind: input, shape index: {}]
  %s1 = inlined_call_operand.vmem [shape: f32[1,128], index: 1, kind: output, shape index: {}]
  $region1: #{tile.41} parent=0
    #allocation0 [shape = 'u8[4096]{0}', space=vmem, size = 0x1000, scoped, tag = 'scoped mem for output reshape']
    %v2 = vld [vmem:[%s0] sm:$0x1]
    %vm3 = vcmask 64512
    %4 = vst.msk [vmem:[#allocation0] sm:$0x1] %vm3, %v2
    %s5 = scalar_lea.vmem %s0, 15
    %v6 = vld [vmem:[%s5] sm:$0x1]
    %7 = vrot.lane.b32.xlu0 %v6, 120
    %v8 = vpop.permute.xlu0 %7
    %vm9 = vcmask 1048512
    %10 = vst.msk [vmem:[#allocation0] sm:$0x1] %vm9, %v8
    %s11 = scalar_lea.vmem %s0, 14
    %v12 = vld [vmem:[%s11] sm:$0x1]
    %13 = vrot.lane.b32.xlu0 %v12, 112
    %v14 = vpop.permute.xlu0 %13
    %vm15 = vcmask 982912
    %16 = vst.msk [vmem:[#allocation0] sm:$0x1] %vm15, %v14
    %s17 = scalar_lea.vmem %s0, 13
    %v18 = vld [vmem:[%s17] sm:$0x1]
    %19 = vrot.lane.b32.xlu0 %v18, 104
    %v20 = vpop.permute.xlu0 %19
    %vm21 = vcmask 917312
    %22 = vst.msk [vmem:[#allocation0] sm:$0x1] %vm21, %v20
    %s23 = scalar_lea.vmem %s0, 12
    %v24 = vld [vmem:[%s23] sm:$0x1]
    %25 = vrot.lane.b32.xlu0 %v24, 96
    %v26 = vpop.permute.xlu0 %25
    %vm27 = vcmask 851712
    %28 = vst.msk [vmem:[#allocation0] sm:$0x1] %vm27, %v26
    %s29 = scalar_lea.vmem %s0, 11
    %v30 = vld [vmem:[%s29] sm:$0x1]
    %31 = vrot.lane.b32.xlu0 %v30, 88
    %v32 = vpop.permute.xlu0 %31
    %vm33 = vcmask 786112
    %34 = vst.msk [vmem:[#allocation0] sm:$0x1] %vm33, %v32
    %s35 = scalar_lea.vmem %s0, 10
    %v36 = vld [vmem:[%s35] sm:$0x1]
    %37 = vrot.lane.b32.xlu0 %v36, 80
    %v38 = vpop.permute.xlu0 %37
    %vm39 = vcmask 720512
    %40 = vst.msk [vmem:[#allocation0] sm:$0x1] %vm39, %v38
    %s41 = scalar_lea.vmem %s0, 9
    %v42 = vld [vmem:[%s41] sm:$0x1]
    %43 = vrot.lane.b32.xlu0 %v42, 72
    %v44 = vpop.permute.xlu0 %43
    %vm45 = vcmask 654912
    %46 = vst.msk [vmem:[#allocation0] sm:$0x1] %vm45, %v44
    %s47 = scalar_lea.vmem %s0, 8
    %v48 = vld [vmem:[%s47] sm:$0x1]
    %49 = vrot.lane.b32.xlu0 %v48, 64
    %v50 = vpop.permute.xlu0 %49
    %vm51 = vcmask 589312
    %52 = vst.msk [vmem:[#allocation0] sm:$0x1] %vm51, %v50
    %s53 = scalar_lea.vmem %s0, 7
    %v54 = vld [vmem:[%s53] sm:$0x1]
    %55 = vrot.lane.b32.xlu0 %v54, 56
    %v56 = vpop.permute.xlu0 %55
    %vm57 = vcmask 523712
    %58 = vst.msk [vmem:[#allocation0] sm:$0x1] %vm57, %v56
    %s59 = scalar_lea.vmem %s0, 6
    %v60 = vld [vmem:[%s59] sm:$0x1]
    %61 = vrot.lane.b32.xlu0 %v60, 48
    %v62 = vpop.permute.xlu0 %61
    %vm63 = vcmask 458112
    %64 = vst.msk [vmem:[#allocation0] sm:$0x1] %vm63, %v62
    %s65 = scalar_lea.vmem %s0, 5
    %v66 = vld [vmem:[%s65] sm:$0x1]
    %67 = vrot.lane.b32.xlu0 %v66, 40
    %v68 = vpop.permute.xlu0 %67
    %vm69 = vcmask 392512
    %70 = vst.msk [vmem:[#allocation0] sm:$0x1] %vm69, %v68
    %s71 = scalar_lea.vmem %s0, 4
    %v72 = vld [vmem:[%s71] sm:$0x1]
    %73 = vrot.lane.b32.xlu0 %v72, 32
    %v74 = vpop.permute.xlu0 %73
    %vm75 = vcmask 326912
    %76 = vst.msk [vmem:[#allocation0] sm:$0x1] %vm75, %v74
    %s77 = scalar_lea.vmem %s0, 3
    %v78 = vld [vmem:[%s77] sm:$0x1]
    %79 = vrot.lane.b32.xlu0 %v78, 24
    %v80 = vpop.permute.xlu0 %79
    %vm81 = vcmask 261312
    %82 = vst.msk [vmem:[#allocation0] sm:$0x1] %vm81, %v80
    %s83 = scalar_lea.vmem %s0, 2
    %v84 = vld [vmem:[%s83] sm:$0x1]
    %85 = vrot.lane.b32.xlu0 %v84, 16
    %v86 = vpop.permute.xlu0 %85
    %vm87 = vcmask 195712
    %88 = vst.msk [vmem:[#allocation0] sm:$0x1] %vm87, %v86
    %s89 = scalar_lea.vmem %s0, 1
    %v90 = vld [vmem:[%s89] sm:$0x1]
    %91 = vrot.lane.b32.xlu0 %v90, 8
    %v92 = vpop.permute.xlu0 %91
    %vm93 = vcmask 130112
    %94 = vst.msk [vmem:[#allocation0] sm:$0x1] %vm93, %v92
    %s96 = ssub.s32 2, 1
    %v97 = vld [vmem:[#allocation0] sm:%s96]
    %s99 = ssub.s32 2, 1
    %100 = vst [vmem:[%s1] sm:%s99] %v97

// kernel: decoder_res_block_pallas.1
$region0: #{decoder_res_block_pallas.1}
  #allocation0 [shape = 'u32[]', space=smem, size = 0x4, offset = 0x4, fixed_abs, tag = 'smem constant byte address 0x4 - core index']
  #allocation1 [shape = 'u32[72,128]{1,0:T(1,128)}', space=vmem, size = 0x9000, scoped, tag = 'internal scratch']
  #allocation2 [shape = 'f32[18,128]{1,0:T(8,128)}', space=vmem, size = 0x3000, scoped, tag = 'scratch operand']
  %s0 = inlined_call_operand.vmem [shape: f32[2,18,64], index: 0, kind: input, shape index: {}]
  %s1 = inlined_call_operand.vmem [shape: f32[2,16,64], index: 1, kind: input, shape index: {}]
  %s2 = inlined_call_operand.vmem [shape: bf16[3,64,128], index: 2, kind: input, shape index: {}]
  %s3 = inlined_call_operand.vmem [shape: bf16[3,128,128], index: 3, kind: input, shape index: {}]
  %s4 = inlined_call_operand.vmem [shape: f32[4,128], index: 4, kind: input, shape index: {}]
  %s5 = inlined_call_operand.vmem [shape: bf16[64,128], index: 5, kind: input, shape index: {}]
  %s6 = inlined_call_operand.vmem [shape: f32[1,128], index: 6, kind: input, shape index: {}]
  %s7 = inlined_call_operand.vmem [shape: f32[2,16,128], index: 7, kind: output, shape index: {}]
  %s8 = sld [smem:[#allocation0]]
  $region61: #{decoder_res_block_pallas.1} parent=0
    _
  %s10 = ssub.s32 1, %s8
  %s11 = scalar_select 0, %s10, %s8
  loop: start=0, step=1, limit=4
  $region2: #{decoder_res_block_pallas.1} parent=0 // loop_pre_header
    _
  $region3: #{decoder_res_block_pallas.1} parent=0 // loop_header
    %s13 = sphi 0, %s17
    %p14 = scmp.ge.s32.totalorder %s13, 4
    %s23 = sphi 0, %s25
    %s26 = sphi 0, %s23
    %s27 = sphi 0, %s26
    %s43 = sphi 0, %s27
    %s49 = sphi 0, %s51
    %s52 = sphi 0, %s49
    %s53 = sphi 0, %s52
    %s69 = sphi 0, %s53
    %s73 = sphi 0, %s73
    %s75 = sphi 0, %s73
    %s76 = sphi 0, %s75
    %s90 = sphi 0, %s76
    %s94 = sphi 0, %s94
    %s96 = sphi 0, %s94
    %s97 = sphi 0, %s96
    %s111 = sphi 0, %s97
    %s115 = sphi 0, %s115
    %s117 = sphi 0, %s115
    %s118 = sphi 0, %s117
    %s132 = sphi 0, %s118
    %s136 = sphi 0, %s136
    %s138 = sphi 0, %s136
    %s139 = sphi 0, %s138
    %s153 = sphi 0, %s139
    %s157 = sphi 0, %s157
    %s159 = sphi 0, %s157
    %s160 = sphi 0, %s159
    %s174 = sphi 0, %s160
    %s180 = sphi 0, %s182
    %s183 = sphi 0, %s180
    %s184 = sphi 0, %s183
    %s200 = sphi 0, %s184
  $region4: #{decoder_res_block_pallas.1} parent=0 // loop_header_branch
    %16 = sbr.rel (%p14) target = $region8
  $region5: #{decoder_res_block_pallas.1} parent=0 // loop_body
    %s18 = ssub.s32 %s13, 1
    %s19 = ssub.s32 %s13, 2
    %s20 = sadd.s32 %s13, 1
    %s21 = ssub.s32 %s13, %s20
    %p22 = scmp.eq.s32.totalorder %s21, 0
    %s24 = sadd.s32 %s23, 1
    %s25 = scalar_select %p22, %s23, %s24
    %p28 = pneg %p22
    %p29 = scmp.eq.s32.totalorder %s13, 1
    %p30 = por %p28, %p29
    %p31 = scmp.ne.s32.totalorder %s23, %s26
    %p32 = scmp.eq.s32.totalorder %s13, 0
    %p33 = por %p31, %p32
    %p34 = scmp.ne.s32.totalorder %s23, %s26
    %p35 = scmp.eq.s32.totalorder %s18, 1
    %p36 = por %p34, %p35
    %p37 = scmp.ne.s32.totalorder %s26, %s27
    %p38 = scmp.eq.s32.totalorder %s18, 0
    %p39 = por %p37, %p38
    %p40 = scmp.ne.s32.totalorder %s26, %s27
    %p41 = scmp.eq.s32.totalorder %s19, 1
    %p42 = por %p40, %p41
    %p44 = scmp.ne.s32.totalorder %s27, %s43
    %p45 = scmp.eq.s32.totalorder %s19, 0
    %p46 = por %p44, %p45
    %s47 = ssub.s32 %s13, %s20
    %p48 = scmp.eq.s32.totalorder %s47, 0
    %s50 = sadd.s32 %s49, 1
    %s51 = scalar_select %p48, %s49, %s50
    %p54 = pneg %p48
    %p55 = scmp.eq.s32.totalorder %s13, 1
    %p56 = por %p54, %p55
    %p57 = scmp.ne.s32.totalorder %s49, %s52
    %p58 = scmp.eq.s32.totalorder %s13, 0
    %p59 = por %p57, %p58
    %p60 = scmp.ne.s32.totalorder %s49, %s52
    %p61 = scmp.eq.s32.totalorder %s18, 1
    %p62 = por %p60, %p61
    %p63 = scmp.ne.s32.totalorder %s52, %s53
    %p64 = scmp.eq.s32.totalorder %s18, 0
    %p65 = por %p63, %p64
    %p66 = scmp.ne.s32.totalorder %s52, %s53
    %p67 = scmp.eq.s32.totalorder %s19, 1
    %p68 = por %p66, %p67
    %p70 = scmp.ne.s32.totalorder %s53, %s69
    %p71 = scmp.eq.s32.totalorder %s19, 0
    %p72 = por %p70, %p71
    %s74 = sadd.s32 %s73, 1
    %p77 = scmp.eq.s32.totalorder %s13, 1
    %p78 = scmp.ne.s32.totalorder %s73, %s75
    %p79 = scmp.eq.s32.totalorder %s13, 0
    %p80 = por %p78, %p79
    %p81 = scmp.ne.s32.totalorder %s73, %s75
    %p82 = scmp.eq.s32.totalorder %s18, 1
    %p83 = por %p81, %p82
    %p84 = scmp.ne.s32.totalorder %s75, %s76
    %p85 = scmp.eq.s32.totalorder %s18, 0
    %p86 = por %p84, %p85
    %p87 = scmp.ne.s32.totalorder %s75, %s76
    %p88 = scmp.eq.s32.totalorder %s19, 1
    %p89 = por %p87, %p88
    %p91 = scmp.ne.s32.totalorder %s76, %s90
    %p92 = scmp.eq.s32.totalorder %s19, 0
    %p93 = por %p91, %p92
    %s95 = sadd.s32 %s94, 1
    %p98 = scmp.eq.s32.totalorder %s13, 1
    %p99 = scmp.ne.s32.totalorder %s94, %s96
    %p100 = scmp.eq.s32.totalorder %s13, 0
    %p101 = por %p99, %p100
    %p102 = scmp.ne.s32.totalorder %s94, %s96
    %p103 = scmp.eq.s32.totalorder %s18, 1
    %p104 = por %p102, %p103
    %p105 = scmp.ne.s32.totalorder %s96, %s97
    %p106 = scmp.eq.s32.totalorder %s18, 0
    %p107 = por %p105, %p106
    %p108 = scmp.ne.s32.totalorder %s96, %s97
    %p109 = scmp.eq.s32.totalorder %s19, 1
    %p110 = por %p108, %p109
    %p112 = scmp.ne.s32.totalorder %s97, %s111
    %p113 = scmp.eq.s32.totalorder %s19, 0
    %p114 = por %p112, %p113
    %s116 = sadd.s32 %s115, 1
    %p119 = scmp.eq.s32.totalorder %s13, 1
    %p120 = scmp.ne.s32.totalorder %s115, %s117
    %p121 = scmp.eq.s32.totalorder %s13, 0
    %p122 = por %p120, %p121
    %p123 = scmp.ne.s32.totalorder %s115, %s117
    %p124 = scmp.eq.s32.totalorder %s18, 1
    %p125 = por %p123, %p124
    %p126 = scmp.ne.s32.totalorder %s117, %s118
    %p127 = scmp.eq.s32.totalorder %s18, 0
    %p128 = por %p126, %p127
    %p129 = scmp.ne.s32.totalorder %s117, %s118
    %p130 = scmp.eq.s32.totalorder %s19, 1
    %p131 = por %p129, %p130
    %p133 = scmp.ne.s32.totalorder %s118, %s132
    %p134 = scmp.eq.s32.totalorder %s19, 0
    %p135 = por %p133, %p134
    %s137 = sadd.s32 %s136, 1
    %p140 = scmp.eq.s32.totalorder %s13, 1
    %p141 = scmp.ne.s32.totalorder %s136, %s138
    %p142 = scmp.eq.s32.totalorder %s13, 0
    %p143 = por %p141, %p142
    %p144 = scmp.ne.s32.totalorder %s136, %s138
    %p145 = scmp.eq.s32.totalorder %s18, 1
    %p146 = por %p144, %p145
    %p147 = scmp.ne.s32.totalorder %s138, %s139
    %p148 = scmp.eq.s32.totalorder %s18, 0
    %p149 = por %p147, %p148
    %p150 = scmp.ne.s32.totalorder %s138, %s139
    %p151 = scmp.eq.s32.totalorder %s19, 1
    %p152 = por %p150, %p151
    %p154 = scmp.ne.s32.totalorder %s139, %s153
    %p155 = scmp.eq.s32.totalorder %s19, 0
    %p156 = por %p154, %p155
    %s158 = sadd.s32 %s157, 1
    %p161 = scmp.eq.s32.totalorder %s13, 1
    %p162 = scmp.ne.s32.totalorder %s157, %s159
    %p163 = scmp.eq.s32.totalorder %s13, 0
    %p164 = por %p162, %p163
    %p165 = scmp.ne.s32.totalorder %s157, %s159
    %p166 = scmp.eq.s32.totalorder %s18, 1
    %p167 = por %p165, %p166
    %p168 = scmp.ne.s32.totalorder %s159, %s160
    %p169 = scmp.eq.s32.totalorder %s18, 0
    %p170 = por %p168, %p169
    %p171 = scmp.ne.s32.totalorder %s159, %s160
    %p172 = scmp.eq.s32.totalorder %s19, 1
    %p173 = por %p171, %p172
    %p175 = scmp.ne.s32.totalorder %s160, %s174
    %p176 = scmp.eq.s32.totalorder %s19, 0
    %p177 = por %p175, %p176
    %s178 = ssub.s32 %s13, %s20
    %p179 = scmp.eq.s32.totalorder %s178, 0
    %s181 = sadd.s32 %s180, 1
    %s182 = scalar_select %p179, %s180, %s181
    %p185 = pneg %p179
    %p186 = scmp.eq.s32.totalorder %s13, 1
    %p187 = por %p185, %p186
    %p188 = scmp.ne.s32.totalorder %s180, %s183
    %p189 = scmp.eq.s32.totalorder %s13, 0
    %p190 = por %p188, %p189
    %p191 = scmp.ne.s32.totalorder %s180, %s183
    %p192 = scmp.eq.s32.totalorder %s18, 1
    %p193 = por %p191, %p192
    %p194 = scmp.ne.s32.totalorder %s183, %s184
    %p195 = scmp.eq.s32.totalorder %s18, 0
    %p196 = por %p194, %p195
    %p197 = scmp.ne.s32.totalorder %s183, %s184
    %p198 = scmp.eq.s32.totalorder %s19, 1
    %p199 = por %p197, %p198
    %p201 = scmp.ne.s32.totalorder %s184, %s200
    %p202 = scmp.eq.s32.totalorder %s19, 0
    %p203 = por %p201, %p202
    %p204 = scmp.le.s32.totalorder 1, %s13
    %p205 = scmp.lt.s32.totalorder %s13, 3
    %p206 = pnand %p204, %p205
    %p207 = pneg %p206
    // Predicated region
    $region9: #{decoder_res_block_pallas.1} parent=5 // pred_check
      _
    $region10: #{decoder_res_block_pallas.1} parent=5 // pred_check_branch
      %209 = sbr.rel (%p206) target = $region12
    $region11: #{decoder_res_block_pallas.1} parent=5 // pred_region
      %s210 = ssub.s32 %s13, 1
      // Predicated region
      $region13: #{decoder_res_block_pallas.1} parent=11 // pred_check
        %p211 = pneg %p86
      $region14: #{decoder_res_block_pallas.1} parent=11 // pred_check_branch
        %213 = sbr.rel (%p211) target = $region16
      $region15: #{decoder_res_block_pallas.1} parent=11 // pred_region
        _
      $region16: #{decoder_res_block_pallas.1} parent=11 // pred_fallthru
        _
      // Predicated region
      $region17: #{decoder_res_block_pallas.1} parent=11 // pred_check
        %p214 = pneg %p107
      $region18: #{decoder_res_block_pallas.1} parent=11 // pred_check_branch
        %216 = sbr.rel (%p214) target = $region20
      $region19: #{decoder_res_block_pallas.1} parent=11 // pred_region
        _
      $region20: #{decoder_res_block_pallas.1} parent=11 // pred_fallthru
        _
      // Predicated region
      $region21: #{decoder_res_block_pallas.1} parent=11 // pred_check
        %p217 = pneg %p128
      $region22: #{decoder_res_block_pallas.1} parent=11 // pred_check_branch
        %219 = sbr.rel (%p217) target = $region24
      $region23: #{decoder_res_block_pallas.1} parent=11 // pred_region
        _
      $region24: #{decoder_res_block_pallas.1} parent=11 // pred_fallthru
        _
      // Predicated region
      $region25: #{decoder_res_block_pallas.1} parent=11 // pred_check
        %p220 = pneg %p149
      $region26: #{decoder_res_block_pallas.1} parent=11 // pred_check_branch
        %222 = sbr.rel (%p220) target = $region28
      $region27: #{decoder_res_block_pallas.1} parent=11 // pred_region
        _
      $region28: #{decoder_res_block_pallas.1} parent=11 // pred_fallthru
        _
      // Predicated region
      $region29: #{decoder_res_block_pallas.1} parent=11 // pred_check
        %p223 = pneg %p170
      $region30: #{decoder_res_block_pallas.1} parent=11 // pred_check_branch
        %225 = sbr.rel (%p223) target = $region32
      $region31: #{decoder_res_block_pallas.1} parent=11 // pred_region
        _
      $region32: #{decoder_res_block_pallas.1} parent=11 // pred_fallthru
        _
    $region12: #{decoder_res_block_pallas.1} parent=5 // pred_fallthru
      _
    %p226 = scmp.lt.s32.totalorder %s13, 2
    // Predicated region
    $region33: #{decoder_res_block_pallas.1} parent=5 // pred_check
      %p227 = pneg %p226
    $region34: #{decoder_res_block_pallas.1} parent=5 // pred_check_branch
      %229 = sbr.rel (%p227) target = $region36
    $region35: #{decoder_res_block_pallas.1} parent=5 // pred_region
      // Predicated region
      $region37: #{decoder_res_block_pallas.1} parent=35 // pred_check
        %p230 = pneg %p33
      $region38: #{decoder_res_block_pallas.1} parent=35 // pred_check_branch
        %232 = sbr.rel (%p230) target = $region40
      $region39: #{decoder_res_block_pallas.1} parent=35 // pred_region
        %p233 = scmp.lt.s32.totalorder %s13, 1
        %s234 = scalar_select %p233, %s13, 1
        %s235 = smul.addr %s234, 3
        %s236 = smul.addr %s235, 8
        %s237 = scalar_lea.vmem %s0, %s236
      $region40: #{decoder_res_block_pallas.1} parent=35 // pred_fallthru
        _
      // Predicated region
      $region41: #{decoder_res_block_pallas.1} parent=35 // pred_check
        %p238 = pneg %p59
      $region42: #{decoder_res_block_pallas.1} parent=35 // pred_check_branch
        %240 = sbr.rel (%p238) target = $region44
      $region43: #{decoder_res_block_pallas.1} parent=35 // pred_region
        %p241 = scmp.lt.s32.totalorder %s13, 1
        %s242 = scalar_select %p241, %s13, 1
        %s243 = smul.addr %s242, 2
        %s244 = smul.addr %s243, 8
        %s245 = scalar_lea.vmem %s1, %s244
      $region44: #{decoder_res_block_pallas.1} parent=35 // pred_fallthru
        _
    $region36: #{decoder_res_block_pallas.1} parent=5 // pred_fallthru
      _
    %p246 = scmp.le.s32.totalorder 1, %s13
    %p247 = scmp.lt.s32.totalorder %s13, 3
    %p248 = pnand %p246, %p247
    %p249 = pneg %p248
    // Predicated region
    $region45: #{decoder_res_block_pallas.1} parent=5 // pred_check
      _
    $region46: #{decoder_res_block_pallas.1} parent=5 // pred_check_branch
      %251 = sbr.rel (%p248) target = $region48
    $region47: #{decoder_res_block_pallas.1} parent=5 // pred_region
      %s252 = ssub.s32 %s13, 1
      %p253 = scmp.lt.s32.totalorder %s18, 1
      %s254 = scalar_select %p253, %s18, 1
      %s255 = smul.addr %s254, 3
      %s256 = smul.addr %s255, 8
      %s257 = scalar_lea.vmem %s0, %s256
      %p258 = pneg %p39
      %p259 = pneg %p36
      %p260 = scmp.lt.s32.totalorder %s18, 1
      %s261 = scalar_select %p260, %s18, 1
      %s262 = smul.addr %s261, 2
      %s263 = smul.addr %s262, 8
      %s264 = scalar_lea.vmem %s1, %s263
      %p265 = pneg %p65
      %p266 = pneg %p62
      %p267 = pneg %p86
      %p268 = pneg %p83
      %p269 = pneg %p107
      %p270 = pneg %p104
      %p271 = pneg %p128
      %p272 = pneg %p125
      %p273 = pneg %p149
      %p274 = pneg %p146
      %p275 = pneg %p170
      %p276 = pneg %p167
      %p277 = pneg %p196
      %p278 = pneg %p193
      %p279 = scmp.lt.s32.totalorder %s18, 1
      %s280 = scalar_select %p279, %s18, 1
      %s281 = smul.addr %s280, 2
      %s282 = smul.addr %s281, 8
      %s283 = scalar_lea.vmem %s7, %s282
      %p284 = scmp.lt.s32.totalorder %s18, 1
      %s285 = scalar_select %p284, %s18, 1
      %s286 = smul.addr %s285, 3
      %s287 = smul.addr %s286, 8
      %s288 = scalar_lea.vmem %s0, %s287
      %p289 = scmp.lt.s32.totalorder %s18, 1
      %s290 = scalar_select %p289, %s18, 1
      %s291 = smul.addr %s290, 2
      %s292 = smul.addr %s291, 8
      %s293 = scalar_lea.vmem %s1, %s292
      %p294 = scmp.lt.s32.totalorder %s18, 1
      %s295 = scalar_select %p294, %s18, 1
      %s296 = smul.addr %s295, 2
      %s297 = smul.addr %s296, 8
      %s298 = scalar_lea.vmem %s7, %s297
      %v300 = vld [vmem:[%s288] sm:$0xff]
      %v301 = vld [vmem:[%s288 + $0x8] sm:$0xff]
      %v302 = vpack.c.bf16 %v301, %v300
      %v303 = vld [vmem:[%s2] sm:$0xf]
      %v304 = vld [vmem:[%s2 + $0x4] sm:$0xf]
      %v305 = vld [vmem:[%s2 + $0x8] sm:$0xf]
      %v306 = vld [vmem:[%s2 + $0xc] sm:$0xf]
      %v307 = vld [vmem:[%s2 + $0x10] sm:$0xf]
      %v308 = vld [vmem:[%s2 + $0x14] sm:$0xf]
      %v309 = vld [vmem:[%s2 + $0x18] sm:$0xf]
      %v310 = vld [vmem:[%s2 + $0x1c] sm:$0xf]
      %v311 = vld [vmem:[%s288 + $0x1] sm:$0xff]
      %v312 = vld [vmem:[%s288 + $0x9] sm:$0xff]
      %v313 = vpack.c.bf16 %v312, %v311
      %s314 = scalar_lea.vmem %s2, 32
      %v315 = vld [vmem:[%s314] sm:$0xf]
      %v316 = vld [vmem:[%s314 + $0x4] sm:$0xf]
      %v317 = vld [vmem:[%s314 + $0x8] sm:$0xf]
      %v318 = vld [vmem:[%s314 + $0xc] sm:$0xf]
      %v319 = vld [vmem:[%s314 + $0x10] sm:$0xf]
      %v320 = vld [vmem:[%s314 + $0x14] sm:$0xf]
      %v321 = vld [vmem:[%s314 + $0x18] sm:$0xf]
      %v322 = vld [vmem:[%s314 + $0x1c] sm:$0xf]
      %v331 = vunpack.c.l.b16 %v315
      %v332 = vunpack.c.l.b16 %v316
      %v333 = vunpack.c.l.b16 %v317
      %v334 = vunpack.c.l.b16 %v318
      %v335 = vunpack.c.l.b16 %v319
      %v336 = vunpack.c.l.b16 %v320
      %v337 = vunpack.c.l.b16 %v321
      %v338 = vunpack.c.l.b16 %v322
      %v339 = vpack.c.b16 %v332, %v331
      %v340 = vpack.c.b16 %v334, %v333
      %v341 = vpack.c.b16 %v336, %v335
      %v342 = vpack.c.b16 %v338, %v337
      %vm347 = vcmask 523264
      %v349 = vsel %vm347, %v313, 0
      %351 = vmatpush.bf16.msra.mxu0 0
      %352 = vmatpush.bf16.msra.mxu0 0
      %353 = vmatpush.bf16.msra.mxu0 0
      %354 = vmatpush.bf16.msra.mxu0 0
      %355 = vmatpush.bf16.msra.mxu0 %v342
      %356 = vmatpush.bf16.msra.mxu0 %v341
      %357 = vmatpush.bf16.msra.mxu0 %v340
      %358 = vmatpush.bf16.msra.mxu0 %v339
      %359 = vmatmul.bf16.gmra.mxu0 %v349
      %v360 = vpop.f32.mrf.mxu0
      %v361 = vadd.f32 0.0, %v360
      %v362 = vpop.f32.mrf.mxu0
      %v363 = vadd.f32 0.0, %v362
      %364 = vdwg.mxu0
      %v373 = vunpack.c.l.b16 %v303
      %v374 = vunpack.c.l.b16 %v304
      %v375 = vunpack.c.l.b16 %v305
      %v376 = vunpack.c.l.b16 %v306
      %v377 = vunpack.c.l.b16 %v307
      %v378 = vunpack.c.l.b16 %v308
      %v379 = vunpack.c.l.b16 %v309
      %v380 = vunpack.c.l.b16 %v310
      %v381 = vpack.c.b16 %v374, %v373
      %v382 = vpack.c.b16 %v376, %v375
      %v383 = vpack.c.b16 %v378, %v377
      %v384 = vpack.c.b16 %v380, %v379
      %v390 = vsel %vm347, %v302, 0
      %392 = vmatpush.bf16.msra.mxu0 0
      %393 = vmatpush.bf16.msra.mxu0 0
      %394 = vmatpush.bf16.msra.mxu0 0
      %395 = vmatpush.bf16.msra.mxu0 0
      %396 = vmatpush.bf16.msra.mxu0 %v384
      %397 = vmatpush.bf16.msra.mxu0 %v383
      %398 = vmatpush.bf16.msra.mxu0 %v382
      %399 = vmatpush.bf16.msra.mxu0 %v381
      %400 = vmatmul.bf16.gmra.mxu0 %v390
      %v401 = vpop.f32.mrf.mxu0
      %v402 = vadd.f32 %v361, %v401
      %v403 = vpop.f32.mrf.mxu0
      %v404 = vadd.f32 %v363, %v403
      %405 = vdwg.mxu0
      %v406 = vld [vmem:[%s288 + $0x2] sm:$0xff]
      %v407 = vld [vmem:[%s288 + $0xa] sm:$0xff]
      %v408 = vpack.c.bf16 %v407, %v406
      %s409 = scalar_lea.vmem %s2, 64
      %v410 = vld [vmem:[%s409] sm:$0xf]
      %v411 = vld [vmem:[%s409 + $0x4] sm:$0xf]
      %v412 = vld [vmem:[%s409 + $0x8] sm:$0xf]
      %v413 = vld [vmem:[%s409 + $0xc] sm:$0xf]
      %v414 = vld [vmem:[%s409 + $0x10] sm:$0xf]
      %v415 = vld [vmem:[%s409 + $0x14] sm:$0xf]
      %v416 = vld [vmem:[%s409 + $0x18] sm:$0xf]
      %v417 = vld [vmem:[%s409 + $0x1c] sm:$0xf]
      %v426 = vunpack.c.l.b16 %v410
      %v427 = vunpack.c.l.b16 %v411
      %v428 = vunpack.c.l.b16 %v412
      %v429 = vunpack.c.l.b16 %v413
      %v430 = vunpack.c.l.b16 %v414
      %v431 = vunpack.c.l.b16 %v415
      %v432 = vunpack.c.l.b16 %v416
      %v433 = vunpack.c.l.b16 %v417
      %v434 = vpack.c.b16 %v427, %v426
      %v435 = vpack.c.b16 %v429, %v428
      %v436 = vpack.c.b16 %v431, %v430
      %v437 = vpack.c.b16 %v433, %v432
      %v443 = vsel %vm347, %v408, 0
      %445 = vmatpush.bf16.msra.mxu0 0
      %446 = vmatpush.bf16.msra.mxu0 0
      %447 = vmatpush.bf16.msra.mxu0 0
      %448 = vmatpush.bf16.msra.mxu0 0
      %449 = vmatpush.bf16.msra.mxu0 %v437
      %450 = vmatpush.bf16.msra.mxu0 %v436
      %451 = vmatpush.bf16.msra.mxu0 %v435
      %452 = vmatpush.bf16.msra.mxu0 %v434
      %453 = vmatmul.bf16.gmra.mxu0 %v443
      %v454 = vpop.f32.mrf.mxu0
      %v455 = vadd.f32 0.0, %v454
      %v456 = vpop.f32.mrf.mxu0
      %v457 = vadd.f32 0.0, %v456
      %458 = vdwg.mxu0
      %v459 = vadd.f32 %v402, %v455
      %v460 = vadd.f32 %v404, %v457
      %v461 = vld [vmem:[%s4] sm:$0x1]
      %v462 = vperm.slane %v461, 0
      %v463 = vmul.f32 %v459, %v462
      %v464 = vmul.f32 %v460, %v462
      %v465 = vld [vmem:[%s4 + $0x1] sm:$0x1]
      %v466 = vperm.slane %v465, 0
      %v467 = vadd.f32 %v463, %v466
      %v468 = vadd.f32 %v464, %v466
      %vm469 = vcmp.gt.f32.partialorder %v467, 0.0
      %vm470 = vcmp.gt.f32.partialorder %v468, 0.0
      %v471 = vmul.f32 %v467, 0.2
      %v472 = vmul.f32 %v468, 0.2
      %v473 = vsel %vm469, %v467, %v471
      %v474 = vsel %vm470, %v468, %v472
      %475 = vst [vmem:[#allocation2] sm:$0x1] 0.0
      %476 = vst [vmem:[#allocation2 + $0x11] sm:$0x1] 0.0
      %477 = vst [vmem:[#allocation2 + $0x1] sm:$0xff] %v473
      %478 = vst [vmem:[#allocation2 + $0x9] sm:$0xff] %v474
      %v479 = vld [vmem:[#allocation2] sm:$0xff]
      %v480 = vld [vmem:[#allocation2 + $0x8] sm:$0xff]
      %v481 = vpack.c.bf16 %v480, %v479
      %v482 = vld [vmem:[%s3] sm:$0xf]
      %v483 = vld [vmem:[%s3 + $0x4] sm:$0xf]
      %v484 = vld [vmem:[%s3 + $0x8] sm:$0xf]
      %v485 = vld [vmem:[%s3 + $0xc] sm:$0xf]
      %v486 = vld [vmem:[%s3 + $0x10] sm:$0xf]
      %v487 = vld [vmem:[%s3 + $0x14] sm:$0xf]
      %v488 = vld [vmem:[%s3 + $0x18] sm:$0xf]
      %v489 = vld [vmem:[%s3 + $0x1c] sm:$0xf]
      %v490 = vld [vmem:[%s3 + $0x20] sm:$0xf]
      %v491 = vld [vmem:[%s3 + $0x24] sm:$0xf]
      %v492 = vld [vmem:[%s3 + $0x28] sm:$0xf]
      %v493 = vld [vmem:[%s3 + $0x2c] sm:$0xf]
      %v494 = vld [vmem:[%s3 + $0x30] sm:$0xf]
      %v495 = vld [vmem:[%s3 + $0x34] sm:$0xf]
      %v496 = vld [vmem:[%s3 + $0x38] sm:$0xf]
      %v497 = vld [vmem:[%s3 + $0x3c] sm:$0xf]
      %v498 = vld [vmem:[#allocation2 + $0x1] sm:$0xff]
      %v499 = vld [vmem:[#allocation2 + $0x9] sm:$0xff]
      %v500 = vpack.c.bf16 %v499, %v498
      %s501 = scalar_lea.vmem %s3, 64
      %v502 = vld [vmem:[%s501] sm:$0xf]
      %v503 = vld [vmem:[%s501 + $0x4] sm:$0xf]
      %v504 = vld [vmem:[%s501 + $0x8] sm:$0xf]
      %v505 = vld [vmem:[%s501 + $0xc] sm:$0xf]
      %v506 = vld [vmem:[%s501 + $0x10] sm:$0xf]
      %v507 = vld [vmem:[%s501 + $0x14] sm:$0xf]
      %v508 = vld [vmem:[%s501 + $0x18] sm:$0xf]
      %v509 = vld [vmem:[%s501 + $0x1c] sm:$0xf]
      %v510 = vld [vmem:[%s501 + $0x20] sm:$0xf]
      %v511 = vld [vmem:[%s501 + $0x24] sm:$0xf]
      %v512 = vld [vmem:[%s501 + $0x28] sm:$0xf]
      %v513 = vld [vmem:[%s501 + $0x2c] sm:$0xf]
      %v514 = vld [vmem:[%s501 + $0x30] sm:$0xf]
      %v515 = vld [vmem:[%s501 + $0x34] sm:$0xf]
      %v516 = vld [vmem:[%s501 + $0x38] sm:$0xf]
      %v517 = vld [vmem:[%s501 + $0x3c] sm:$0xf]
      %v534 = vunpack.c.l.b16 %v502
      %v535 = vunpack.c.l.b16 %v503
      %v536 = vunpack.c.l.b16 %v504
      %v537 = vunpack.c.l.b16 %v505
      %v538 = vunpack.c.l.b16 %v506
      %v539 = vunpack.c.l.b16 %v507
      %v540 = vunpack.c.l.b16 %v508
      %v541 = vunpack.c.l.b16 %v509
      %v542 = vunpack.c.l.b16 %v510
      %v543 = vunpack.c.l.b16 %v511
      %v544 = vunpack.c.l.b16 %v512
      %v545 = vunpack.c.l.b16 %v513
      %v546 = vunpack.c.l.b16 %v514
      %v547 = vunpack.c.l.b16 %v515
      %v548 = vunpack.c.l.b16 %v516
      %v549 = vunpack.c.l.b16 %v517
      %v550 = vpack.c.b16 %v535, %v534
      %v551 = vpack.c.b16 %v537, %v536
      %v552 = vpack.c.b16 %v539, %v538
      %v553 = vpack.c.b16 %v541, %v540
      %v554 = vpack.c.b16 %v543, %v542
      %v555 = vpack.c.b16 %v545, %v544
      %v556 = vpack.c.b16 %v547, %v546
      %v557 = vpack.c.b16 %v549, %v548
      %566 = vmatpush.bf16.msra.mxu0 %v557
      %567 = vmatpush.bf16.msra.mxu0 %v556
      %568 = vmatpush.bf16.msra.mxu0 %v555
      %569 = vmatpush.bf16.msra.mxu0 %v554
      %570 = vmatpush.bf16.msra.mxu0 %v553
      %571 = vmatpush.bf16.msra.mxu0 %v552
      %572 = vmatpush.bf16.msra.mxu0 %v551
      %573 = vmatpush.bf16.msra.mxu0 %v550
      %574 = vmatmul.bf16.gmra.mxu0 %v500
      %v575 = vpop.f32.mrf.mxu0
      %v576 = vadd.f32 0.0, %v575
      %v577 = vpop.f32.mrf.mxu0
      %v578 = vadd.f32 0.0, %v577
      %579 = vdwg.mxu0
      %v596 = vunpack.c.l.b16 %v482
      %v597 = vunpack.c.l.b16 %v483
      %v598 = vunpack.c.l.b16 %v484
      %v599 = vunpack.c.l.b16 %v485
      %v600 = vunpack.c.l.b16 %v486
      %v601 = vunpack.c.l.b16 %v487
      %v602 = vunpack.c.l.b16 %v488
      %v603 = vunpack.c.l.b16 %v489
      %v604 = vunpack.c.l.b16 %v490
      %v605 = vunpack.c.l.b16 %v491
      %v606 = vunpack.c.l.b16 %v492
      %v607 = vunpack.c.l.b16 %v493
      %v608 = vunpack.c.l.b16 %v494
      %v609 = vunpack.c.l.b16 %v495
      %v610 = vunpack.c.l.b16 %v496
      %v611 = vunpack.c.l.b16 %v497
      %v612 = vpack.c.b16 %v597, %v596
      %v613 = vpack.c.b16 %v599, %v598
      %v614 = vpack.c.b16 %v601, %v600
      %v615 = vpack.c.b16 %v603, %v602
      %v616 = vpack.c.b16 %v605, %v604
      %v617 = vpack.c.b16 %v607, %v606
      %v618 = vpack.c.b16 %v609, %v608
      %v619 = vpack.c.b16 %v611, %v610
      %628 = vmatpush.bf16.msra.mxu0 %v619
      %629 = vmatpush.bf16.msra.mxu0 %v618
      %630 = vmatpush.bf16.msra.mxu0 %v617
      %631 = vmatpush.bf16.msra.mxu0 %v616
      %632 = vmatpush.bf16.msra.mxu0 %v615
      %633 = vmatpush.bf16.msra.mxu0 %v614
      %634 = vmatpush.bf16.msra.mxu0 %v613
      %635 = vmatpush.bf16.msra.mxu0 %v612
      %636 = vmatmul.bf16.gmra.mxu0 %v481
      %v637 = vpop.f32.mrf.mxu0
      %v638 = vadd.f32 %v576, %v637
      %v639 = vpop.f32.mrf.mxu0
      %v640 = vadd.f32 %v578, %v639
      %641 = vdwg.mxu0
      %v642 = vld [vmem:[#allocation2 + $0x2] sm:$0xff]
      %v643 = vld [vmem:[#allocation2 + $0xa] sm:$0xff]
      %v644 = vpack.c.bf16 %v643, %v642
      %s645 = scalar_lea.vmem %s3, 128
      %v646 = vld [vmem:[%s645] sm:$0xf]
      %v647 = vld [vmem:[%s645 + $0x4] sm:$0xf]
      %v648 = vld [vmem:[%s645 + $0x8] sm:$0xf]
      %v649 = vld [vmem:[%s645 + $0xc] sm:$0xf]
      %v650 = vld [vmem:[%s645 + $0x10] sm:$0xf]
      %v651 = vld [vmem:[%s645 + $0x14] sm:$0xf]
      %v652 = vld [vmem:[%s645 + $0x18] sm:$0xf]
      %v653 = vld [vmem:[%s645 + $0x1c] sm:$0xf]
      %v654 = vld [vmem:[%s645 + $0x20] sm:$0xf]
      %v655 = vld [vmem:[%s645 + $0x24] sm:$0xf]
      %v656 = vld [vmem:[%s645 + $0x28] sm:$0xf]
      %v657 = vld [vmem:[%s645 + $0x2c] sm:$0xf]
      %v658 = vld [vmem:[%s645 + $0x30] sm:$0xf]
      %v659 = vld [vmem:[%s645 + $0x34] sm:$0xf]
      %v660 = vld [vmem:[%s645 + $0x38] sm:$0xf]
      %v661 = vld [vmem:[%s645 + $0x3c] sm:$0xf]
      %v678 = vunpack.c.l.b16 %v646
      %v679 = vunpack.c.l.b16 %v647
      %v680 = vunpack.c.l.b16 %v648
      %v681 = vunpack.c.l.b16 %v649
      %v682 = vunpack.c.l.b16 %v650
      %v683 = vunpack.c.l.b16 %v651
      %v684 = vunpack.c.l.b16 %v652
      %v685 = vunpack.c.l.b16 %v653
      %v686 = vunpack.c.l.b16 %v654
      %v687 = vunpack.c.l.b16 %v655
      %v688 = vunpack.c.l.b16 %v656
      %v689 = vunpack.c.l.b16 %v657
      %v690 = vunpack.c.l.b16 %v658
      %v691 = vunpack.c.l.b16 %v659
      %v692 = vunpack.c.l.b16 %v660
      %v693 = vunpack.c.l.b16 %v661
      %v694 = vpack.c.b16 %v679, %v678
      %v695 = vpack.c.b16 %v681, %v680
      %v696 = vpack.c.b16 %v683, %v682
      %v697 = vpack.c.b16 %v685, %v684
      %v698 = vpack.c.b16 %v687, %v686
      %v699 = vpack.c.b16 %v689, %v688
      %v700 = vpack.c.b16 %v691, %v690
      %v701 = vpack.c.b16 %v693, %v692
      %710 = vmatpush.bf16.msra.mxu0 %v701
      %711 = vmatpush.bf16.msra.mxu0 %v700
      %712 = vmatpush.bf16.msra.mxu0 %v699
      %713 = vmatpush.bf16.msra.mxu0 %v698
      %714 = vmatpush.bf16.msra.mxu0 %v697
      %715 = vmatpush.bf16.msra.mxu0 %v696
      %716 = vmatpush.bf16.msra.mxu0 %v695
      %717 = vmatpush.bf16.msra.mxu0 %v694
      %718 = vmatmul.bf16.gmra.mxu0 %v644
      %v719 = vpop.f32.mrf.mxu0
      %v720 = vadd.f32 0.0, %v719
      %v721 = vpop.f32.mrf.mxu0
      %v722 = vadd.f32 0.0, %v721
      %723 = vdwg.mxu0
      %v724 = vadd.f32 %v638, %v720
      %v725 = vadd.f32 %v640, %v722
      %v726 = vld [vmem:[%s4 + $0x2] sm:$0x1]
      %v727 = vperm.slane %v726, 0
      %v728 = vmul.f32 %v724, %v727
      %v729 = vmul.f32 %v725, %v727
      %v730 = vld [vmem:[%s4 + $0x3] sm:$0x1]
      %v731 = vperm.slane %v730, 0
      %v732 = vadd.f32 %v728, %v731
      %v733 = vadd.f32 %v729, %v731
      %vm734 = vcmp.gt.f32.partialorder %v732, 0.0
      %vm735 = vcmp.gt.f32.partialorder %v733, 0.0
      %v736 = vmul.f32 %v732, 0.2
      %v737 = vmul.f32 %v733, 0.2
      %v738 = vsel %vm734, %v732, %v736
      %v739 = vsel %vm735, %v733, %v737
      %v740 = vld [vmem:[%s293] sm:$0xff]
      %v741 = vld [vmem:[%s293 + $0x8] sm:$0xff]
      %v742 = vpack.c.bf16 %v741, %v740
      %v743 = vld [vmem:[%s5] sm:$0xf]
      %v744 = vld [vmem:[%s5 + $0x4] sm:$0xf]
      %v745 = vld [vmem:[%s5 + $0x8] sm:$0xf]
      %v746 = vld [vmem:[%s5 + $0xc] sm:$0xf]
      %v747 = vld [vmem:[%s5 + $0x10] sm:$0xf]
      %v748 = vld [vmem:[%s5 + $0x14] sm:$0xf]
      %v749 = vld [vmem:[%s5 + $0x18] sm:$0xf]
      %v750 = vld [vmem:[%s5 + $0x1c] sm:$0xf]
      %v751 = vld [vmem:[%s6] sm:$0x1]
      %v753 = vperm.slane %v751, 0
      %v763 = vunpack.c.l.b16 %v743
      %v764 = vunpack.c.l.b16 %v744
      %v765 = vunpack.c.l.b16 %v745
      %v766 = vunpack.c.l.b16 %v746
      %v767 = vunpack.c.l.b16 %v747
      %v768 = vunpack.c.l.b16 %v748
      %v769 = vunpack.c.l.b16 %v749
      %v770 = vunpack.c.l.b16 %v750
      %v771 = vpack.c.b16 %v764, %v763
      %v772 = vpack.c.b16 %v766, %v765
      %v773 = vpack.c.b16 %v768, %v767
      %v774 = vpack.c.b16 %v770, %v769
      %v780 = vsel %vm347, %v742, 0
      %782 = vmatpush.bf16.msra.mxu0 0
      %783 = vmatpush.bf16.msra.mxu0 0
      %784 = vmatpush.bf16.msra.mxu0 0
      %785 = vmatpush.bf16.msra.mxu0 0
      %786 = vmatpush.bf16.msra.mxu0 %v774
      %787 = vmatpush.bf16.msra.mxu0 %v773
      %788 = vmatpush.bf16.msra.mxu0 %v772
      %789 = vmatpush.bf16.msra.mxu0 %v771
      %790 = vmatmul.bf16.gmra.mxu0 %v780
      %v791 = vpop.f32.mrf.mxu0
      %v792 = vadd.f32 %v753, %v791
      %v793 = vpop.f32.mrf.mxu0
      %v794 = vadd.f32 %v753, %v793
      %795 = vdwg.mxu0
      %v796 = vadd.f32 %v792, %v738
      %v797 = vadd.f32 %v794, %v739
      %v798 = vmul.f32 %v796, 0.70710677
      %v799 = vmul.f32 %v797, 0.70710677
      %800 = vst [vmem:[%s298] sm:$0xff] %v798
      %801 = vst [vmem:[%s298 + $0x8] sm:$0xff] %v799
      %p802 = scmp.lt.s32.totalorder %s18, 1
      %s803 = scalar_select %p802, %s18, 1
      %s804 = smul.addr %s803, 2
      %s805 = smul.addr %s804, 8
      %s806 = scalar_lea.vmem %s7, %s805
      // Predicated region
      $region49: #{decoder_res_block_pallas.1} parent=47 // pred_check
        %p807 = pneg %p193
      $region50: #{decoder_res_block_pallas.1} parent=47 // pred_check_branch
        %809 = sbr.rel (%p807) target = $region52
      $region51: #{decoder_res_block_pallas.1} parent=47 // pred_region
        _
      $region52: #{decoder_res_block_pallas.1} parent=47 // pred_fallthru
        _
    $region48: #{decoder_res_block_pallas.1} parent=5 // pred_fallthru
      _
    %p810 = scmp.le.s32.totalorder 2, %s13
    // Predicated region
    $region53: #{decoder_res_block_pallas.1} parent=5 // pred_check
      %p811 = pneg %p810
    $region54: #{decoder_res_block_pallas.1} parent=5 // pred_check_branch
      %813 = sbr.rel (%p811) target = $region56
    $region55: #{decoder_res_block_pallas.1} parent=5 // pred_region
      %s814 = ssub.s32 %s13, 2
      // Predicated region
      $region57: #{decoder_res_block_pallas.1} parent=55 // pred_check
        %p815 = pneg %p199
      $region58: #{decoder_res_block_pallas.1} parent=55 // pred_check_branch
        %817 = sbr.rel (%p815) target = $region60
      $region59: #{decoder_res_block_pallas.1} parent=55 // pred_region
        %p818 = scmp.lt.s32.totalorder %s19, 1
        %s819 = scalar_select %p818, %s19, 1
        %s820 = smul.addr %s819, 2
        %s821 = smul.addr %s820, 8
        %s822 = scalar_lea.vmem %s7, %s821
      $region60: #{decoder_res_block_pallas.1} parent=55 // pred_fallthru
        _
    $region56: #{decoder_res_block_pallas.1} parent=5 // pred_fallthru
      _
  $region6: #{decoder_res_block_pallas.1} parent=0 // loop_footer
    %s17 = sadd.s32 1, %s13
  $region7: #{decoder_res_block_pallas.1} parent=0 // loop_footer_branch
    %12 = sbr.rel target = $region3
  $region8: #{decoder_res_block_pallas.1} parent=0 // loop_exit
    _

</llo_original>
